<compile_context>
chip_gen: v7x
topology: tpu7x:2x2x1
jax: 0.10.0
libtpu: 0.0.40
codegen_flags: <defaults>
</compile_context>

<pallas_src>
import jax
import jax.numpy as jnp
from jax.experimental import pallas as pl
from jax.experimental.pallas import tpu as pltpu


_MAX_L_TILE = 8192   # lane-dense chunk of the flattened B*L axis


def _round_up(x, m):
    return ((x + m - 1) // m) * m


def _encoder_kernel(x_ref, dem_ref, sw_ref, sb_ref, dwe_ref, dbe_ref,
                    static_ref, dyn_ref):
    """Pointwise-conv encoder over one lane-dense chunk (pure VPU work).

    Kernel-visible shapes:
      x_ref      : (Cin, TL)  VMEM  flattened location (+depot) columns
      dem_ref    : (1,  TL)   VMEM  flattened demand
      sw_ref     : (H, Cin)   VMEM  static conv weight   (resident)
      sb_ref     : (H, 1)     VMEM  static conv bias     (resident)
      dwe_ref    : (H, 1)     VMEM  folded dynamic weight (Wd0 - Wd1)
      dbe_ref    : (H, 1)     VMEM  folded dynamic bias   (Wd1*cap + bd)
      static_ref : (H, TL)    output chunk (full-width lane-dense stores)
      dyn_ref    : (H, TL)    output chunk
    """
    cin = x_ref.shape[0]

    # static branch: out[h, n] = sum_c sw[h, c] * x[c, n] + sb[h]
    acc = sw_ref[:, 0:1] * x_ref[0:1, :]                     # (H, TL)
    for c in range(1, cin):
        acc = acc + sw_ref[:, c:c + 1] * x_ref[c:c + 1, :]
    static_ref[...] = (acc + sb_ref[...]).astype(static_ref.dtype)

    # dynamic branch (algebra pre-folded): out[h, n] = w_eff[h]*d[n] + b_eff[h]
    dyn_ref[...] = (dwe_ref[...] * dem_ref[...] + dbe_ref[...]).astype(dyn_ref.dtype)


def encoder_forward(params, location, demand, depot, vehicle_capacity):
    """Matches Encoder.forward semantics.

    location: (B, L, Cin)   demand: (B, L)   depot: (B, Cin)
    vehicle_capacity: scalar
    returns ((static_encoded (B,H,L), dynamic_encoded (B,H,L)),
             depot_embedding (B,H,1))
    """
    B, L, Cin = location.shape
    H = params["static_w"].shape[0]
    dtype = location.dtype

    # ---- parameters (weights kept resident in VMEM across the grid) ----
    sw = params["static_w"].reshape(H, Cin).astype(dtype)     # (H, Cin)
    sb = params["static_b"].reshape(H, 1).astype(dtype)       # (H, 1)
    dw = params["dynamic_w"].reshape(H, 2).astype(dtype)      # (H, 2)  (module has 2 dyn channels)
    db = params["dynamic_b"].reshape(H, 1).astype(dtype)      # (H, 1)
    cap = jnp.asarray(vehicle_capacity, dtype=dtype)
    dwe = dw[:, 0:1] - dw[:, 1:2]                              # (H, 1)
    dbe = dw[:, 1:2] * cap + db                                # (H, 1)

    # ---- single repack: flatten B*L into the lane axis, append depot cols ----
    n_loc = B * L
    n_tot = n_loc + B                                          # +B depot columns
    np128 = _round_up(n_tot, 128)
    n_steps = pl.cdiv(np128, _MAX_L_TILE)
    tl = _round_up(pl.cdiv(np128, n_steps), 128)
    npad = n_steps * tl

    loc_flat = jnp.transpose(location, (2, 0, 1)).reshape(Cin, n_loc)   # (Cin, B*L)
    dep_flat = jnp.transpose(depot, (1, 0)).astype(dtype)               # (Cin, B)
    x_flat = jnp.concatenate([loc_flat, dep_flat], axis=1)              # (Cin, n_tot)
    x_flat = jnp.pad(x_flat, ((0, 0), (0, npad - n_tot)))               # (Cin, npad)
    dem_flat = jnp.pad(demand.reshape(1, n_loc).astype(dtype),
                       ((0, 0), (0, npad - n_loc)))                     # (1, npad)

    # VMEM budget: double-buffered in/out blocks + headroom (safe on v5e..v7x).
    per_step_bytes = 4 * tl * (Cin + 1 + 2 * H)
    vmem_limit = int(min(max(32 << 20, 3 * per_step_bytes), 48 << 20))

    grid_spec = pltpu.PrefetchScalarGridSpec(
        num_scalar_prefetch=0,
        grid=(n_steps,),
        in_specs=[
            pl.BlockSpec((Cin, tl), lambda i: (0, i)),   # flattened location(+depot)
            pl.BlockSpec((1, tl), lambda i: (0, i)),     # flattened demand
            pl.BlockSpec((H, Cin), lambda i: (0, 0)),    # static W  (resident)
            pl.BlockSpec((H, 1), lambda i: (0, 0)),      # static b  (resident)
            pl.BlockSpec((H, 1), lambda i: (0, 0)),      # dyn w_eff (resident)
            pl.BlockSpec((H, 1), lambda i: (0, 0)),      # dyn b_eff (resident)
        ],
        out_specs=[
            pl.BlockSpec((H, tl), lambda i: (0, i)),     # static out (lane-dense)
            pl.BlockSpec((H, tl), lambda i: (0, i)),     # dynamic out (lane-dense)
        ],
    )

    static_flat, dyn_flat = pl.pallas_call(
        _encoder_kernel,
        out_shape=(
            jax.ShapeDtypeStruct((H, npad), dtype),
            jax.ShapeDtypeStruct((H, npad), dtype),
        ),
        grid_spec=grid_spec,
        compiler_params=pltpu.CompilerParams(
            dimension_semantics=("parallel",),
            vmem_limit_bytes=vmem_limit,
        ),
    )(x_flat, dem_flat, sw, sb, dwe, dbe)

    # ---- un-flatten back to the module's output layout ----
    static_enc = jnp.transpose(static_flat[:, :n_loc].reshape(H, B, L), (1, 0, 2))
    dynamic_enc = jnp.transpose(dyn_flat[:, :n_loc].reshape(H, B, L), (1, 0, 2))
    depot_emb = jnp.transpose(static_flat[:, n_loc:n_tot], (1, 0))[:, :, None]

    return (static_enc, dynamic_enc), depot_emb


if __name__ == "__main__":
    B, L, Cin, H = 2, 16, 2, 32
    vehicle_capacity = 1.0

    key = jax.random.PRNGKey(0)
    k_loc, k_dem, k_dep, k_sw, k_sb, k_dw, k_db = jax.random.split(key, 7)

    location = jax.random.normal(k_loc, (B, L, Cin), dtype=jnp.float32)
    demand = jax.random.uniform(k_dem, (B, L), dtype=jnp.float32)
    depot = jax.random.normal(k_dep, (B, Cin), dtype=jnp.float32)

    params = {
        "static_w": 0.1 * jax.random.normal(k_sw, (H, Cin, 1), dtype=jnp.float32),
        "static_b": 0.1 * jax.random.normal(k_sb, (H,), dtype=jnp.float32),
        "dynamic_w": 0.1 * jax.random.normal(k_dw, (H, Cin, 1), dtype=jnp.float32),
        "dynamic_b": 0.1 * jax.random.normal(k_db, (H,), dtype=jnp.float32),
    }

    run = jax.jit(
        lambda p, loc, dem, dep: encoder_forward(p, loc, dem, dep, vehicle_capacity))
    (static_enc, dynamic_enc), depot_emb = jax.block_until_ready(
        run(params, location, demand, depot))

    # Plain-JAX reference (matches PyTorch Encoder.forward)
    sw2 = params["static_w"][:, :, 0]
    sb1 = params["static_b"]
    dw2 = params["dynamic_w"][:, :, 0]
    db1 = params["dynamic_b"]
    ref_static = jnp.einsum("blc,hc->bhl", location, sw2) + sb1[None, :, None]
    ref_depot = (jnp.einsum("bc,hc->bh", depot, sw2) + sb1[None, :])[:, :, None]
    ref_dyn_in = jnp.stack((demand, vehicle_capacity - demand), axis=1)   # (B,2,L)
    ref_dynamic = jnp.einsum("bcl,hc->bhl", ref_dyn_in, dw2) + db1[None, :, None]

    assert static_enc.shape == (B, H, L)
    assert dynamic_enc.shape == (B, H, L)
    assert depot_emb.shape == (B, H, 1)
    assert jnp.allclose(static_enc, ref_static, atol=1e-5)
    assert jnp.allclose(dynamic_enc, ref_dynamic, atol=1e-5)
    assert jnp.allclose(depot_emb, ref_depot, atol=1e-5)

    print("KERNEL_OK")
</pallas_src>

<mosaic_0001>
module attributes {stable_mosaic.version = 11 : i64} {
  func.func @_encoder_kernel(%arg0: i32, %arg1: memref<2x128xf32, #tpu.memory_space<vmem>>, %arg2: memref<1x128xf32, #tpu.memory_space<vmem>>, %arg3: memref<32x2xf32, #tpu.memory_space<vmem>>, %arg4: memref<32x1xf32, #tpu.memory_space<vmem>>, %arg5: memref<32x1xf32, #tpu.memory_space<vmem>>, %arg6: memref<32x1xf32, #tpu.memory_space<vmem>>, %arg7: memref<32x128xf32, #tpu.memory_space<vmem>>, %arg8: memref<32x128xf32, #tpu.memory_space<vmem>>) attributes {dimension_semantics = [#tpu.dimension_semantics<parallel>], iteration_bounds = array<i64: 1>, scalar_prefetch = 0 : i64, scratch_operands = 0 : i64, tpu.core_type = #tpu.core_type<tc>, window_params = [{transform_indices = @transform_0, window_bounds = array<i64: 2, 128>}, {transform_indices = @transform_1, window_bounds = array<i64: 1, 128>}, {pipeline_mode = #tpu.pipeline_mode<synchronous>, transform_indices = @transform_2, window_bounds = array<i64: 32, 2>}, {pipeline_mode = #tpu.pipeline_mode<synchronous>, transform_indices = @transform_3, window_bounds = array<i64: 32, 1>}, {pipeline_mode = #tpu.pipeline_mode<synchronous>, transform_indices = @transform_4, window_bounds = array<i64: 32, 1>}, {pipeline_mode = #tpu.pipeline_mode<synchronous>, transform_indices = @transform_5, window_bounds = array<i64: 32, 1>}, {transform_indices = @transform_6, window_bounds = array<i64: 32, 128>}, {transform_indices = @transform_7, window_bounds = array<i64: 32, 128>}]} {
    %c0 = arith.constant 0 : index
    %c0_0 = arith.constant 0 : index
    %0 = vector.load %arg3[%c0, %c0_0] : memref<32x2xf32, #tpu.memory_space<vmem>>, vector<32x1xf32>
    %c0_1 = arith.constant 0 : index
    %c0_2 = arith.constant 0 : index
    %1 = vector.load %arg1[%c0_1, %c0_2] : memref<2x128xf32, #tpu.memory_space<vmem>>, vector<1x128xf32>
    %2 = vector.broadcast %0 : vector<32x1xf32> to vector<32x128xf32>
    %3 = vector.broadcast %1 : vector<1x128xf32> to vector<32x128xf32>
    %4 = arith.mulf %2, %3 : vector<32x128xf32>
    %c0_3 = arith.constant 0 : index
    %c1 = arith.constant 1 : index
    %5 = vector.load %arg3[%c0_3, %c1] : memref<32x2xf32, #tpu.memory_space<vmem>>, vector<32x1xf32>
    %c1_4 = arith.constant 1 : index
    %c0_5 = arith.constant 0 : index
    %6 = vector.load %arg1[%c1_4, %c0_5] : memref<2x128xf32, #tpu.memory_space<vmem>>, vector<1x128xf32>
    %7 = vector.broadcast %5 : vector<32x1xf32> to vector<32x128xf32>
    %8 = vector.broadcast %6 : vector<1x128xf32> to vector<32x128xf32>
    %9 = arith.mulf %7, %8 : vector<32x128xf32>
    %10 = arith.addf %4, %9 : vector<32x128xf32>
    %c0_6 = arith.constant 0 : index
    %c0_7 = arith.constant 0 : index
    %11 = vector.load %arg4[%c0_6, %c0_7] : memref<32x1xf32, #tpu.memory_space<vmem>>, vector<32x1xf32>
    %12 = vector.broadcast %11 : vector<32x1xf32> to vector<32x128xf32>
    %13 = arith.addf %10, %12 : vector<32x128xf32>
    %c0_8 = arith.constant 0 : index
    %c0_9 = arith.constant 0 : index
    %14 = vector.load %arg7[%c0_8, %c0_9] : memref<32x128xf32, #tpu.memory_space<vmem>>, vector<32x128xf32>
    tpu.vector_store %arg7[%c0_8, %c0_9], %13 {strides = array<i32>} : memref<32x128xf32, #tpu.memory_space<vmem>>, vector<32x128xf32>,
    %c0_10 = arith.constant 0 : index
    %c0_11 = arith.constant 0 : index
    %15 = vector.load %arg5[%c0_10, %c0_11] : memref<32x1xf32, #tpu.memory_space<vmem>>, vector<32x1xf32>
    %c0_12 = arith.constant 0 : index
    %c0_13 = arith.constant 0 : index
    %16 = vector.load %arg2[%c0_12, %c0_13] : memref<1x128xf32, #tpu.memory_space<vmem>>, vector<1x128xf32>
    %17 = vector.broadcast %15 : vector<32x1xf32> to vector<32x128xf32>
    %18 = vector.broadcast %16 : vector<1x128xf32> to vector<32x128xf32>
    %19 = arith.mulf %17, %18 : vector<32x128xf32>
    %c0_14 = arith.constant 0 : index
    %c0_15 = arith.constant 0 : index
    %20 = vector.load %arg6[%c0_14, %c0_15] : memref<32x1xf32, #tpu.memory_space<vmem>>, vector<32x1xf32>
    %21 = vector.broadcast %20 : vector<32x1xf32> to vector<32x128xf32>
    %22 = arith.addf %19, %21 : vector<32x128xf32>
    %c0_16 = arith.constant 0 : index
    %c0_17 = arith.constant 0 : index
    %23 = vector.load %arg8[%c0_16, %c0_17] : memref<32x128xf32, #tpu.memory_space<vmem>>, vector<32x128xf32>
    tpu.vector_store %arg8[%c0_16, %c0_17], %22 {strides = array<i32>} : memref<32x128xf32, #tpu.memory_space<vmem>>, vector<32x128xf32>,
    return
  }
  func.func @transform_0(%arg0: i32) -> (i32, i32) {
    %c0_i32 = arith.constant 0 : i32
    %c0_i32_0 = arith.constant 0 : i32
    return %c0_i32, %arg0 : i32, i32
  }
  func.func @transform_1(%arg0: i32) -> (i32, i32) {
    %c0_i32 = arith.constant 0 : i32
    %c0_i32_0 = arith.constant 0 : i32
    return %c0_i32, %arg0 : i32, i32
  }
  func.func @transform_2(%arg0: i32) -> (i32, i32) {
    %c0_i32 = arith.constant 0 : i32
    %c0_i32_0 = arith.constant 0 : i32
    %c0_i32_1 = arith.constant 0 : i32
    return %c0_i32, %c0_i32_0 : i32, i32
  }
  func.func @transform_3(%arg0: i32) -> (i32, i32) {
    %c0_i32 = arith.constant 0 : i32
    %c0_i32_0 = arith.constant 0 : i32
    %c0_i32_1 = arith.constant 0 : i32
    return %c0_i32, %c0_i32_0 : i32, i32
  }
  func.func @transform_4(%arg0: i32) -> (i32, i32) {
    %c0_i32 = arith.constant 0 : i32
    %c0_i32_0 = arith.constant 0 : i32
    %c0_i32_1 = arith.constant 0 : i32
    return %c0_i32, %c0_i32_0 : i32, i32
  }
  func.func @transform_5(%arg0: i32) -> (i32, i32) {
    %c0_i32 = arith.constant 0 : i32
    %c0_i32_0 = arith.constant 0 : i32
    %c0_i32_1 = arith.constant 0 : i32
    return %c0_i32, %c0_i32_0 : i32, i32
  }
  func.func @transform_6(%arg0: i32) -> (i32, i32) {
    %c0_i32 = arith.constant 0 : i32
    %c0_i32_0 = arith.constant 0 : i32
    return %c0_i32, %arg0 : i32, i32
  }
  func.func @transform_7(%arg0: i32) -> (i32, i32) {
    %c0_i32 = arith.constant 0 : i32
    %c0_i32_0 = arith.constant 0 : i32
    return %c0_i32, %arg0 : i32, i32
  }
}

</mosaic_0001>

<llo_original>
// kernel: _lambda_.1
$region0: #{_lambda_.1}
  #allocation0 [shape = 'u32[]', space=smem, size = 0x4, offset = 0x4, fixed_abs, tag = 'smem constant byte address 0x4 - core index']
  #allocation1 [shape = 'u32[144,128]{1,0:T(1,128)}', space=vmem, size = 0x12000, scoped, tag = 'internal scratch']
  %s0 = inlined_call_operand.vmem [shape: f32[2,128], index: 0, kind: input, shape index: {}]
  %s1 = inlined_call_operand.vmem [shape: f32[1,128], index: 1, kind: input, shape index: {}]
  %s2 = inlined_call_operand.vmem [shape: f32[32,2], index: 2, kind: input, shape index: {}]
  %s3 = inlined_call_operand.vmem [shape: f32[32,1], index: 3, kind: input, shape index: {}]
  %s4 = inlined_call_operand.vmem [shape: f32[32,1], index: 4, kind: input, shape index: {}]
  %s5 = inlined_call_operand.vmem [shape: f32[32,1], index: 5, kind: input, shape index: {}]
  %s6 = inlined_call_operand.vmem [shape: f32[32,128], index: 6, kind: output, shape index: {0}]
  %s7 = inlined_call_operand.vmem [shape: f32[32,128], index: 7, kind: output, shape index: {1}]
  %8 = xla_tuple %s6, %s7
  %s9 = sld [smem:[#allocation0]]
  $region42: #{_lambda_.1} parent=0
    _
  %s11 = ssub.s32 1, %s9
  %s12 = scalar_select 0, %s11, %s9
  // Predicated region
  $region2: #{_lambda_.1} parent=0 // pred_check
    _
  $region3: #{_lambda_.1} parent=0 // pred_check_branch
    %14 = sbr.rel (0) target = $region5
  $region4: #{_lambda_.1} parent=0 // pred_region
    _
  $region5: #{_lambda_.1} parent=0 // pred_fallthru
    _
  // Predicated region
  $region6: #{_lambda_.1} parent=0 // pred_check
    _
  $region7: #{_lambda_.1} parent=0 // pred_check_branch
    %16 = sbr.rel (0) target = $region9
  $region8: #{_lambda_.1} parent=0 // pred_region
    _
  $region9: #{_lambda_.1} parent=0 // pred_fallthru
    _
  // Predicated region
  $region10: #{_lambda_.1} parent=0 // pred_check
    _
  $region11: #{_lambda_.1} parent=0 // pred_check_branch
    %18 = sbr.rel (0) target = $region13
  $region12: #{_lambda_.1} parent=0 // pred_region
    _
  $region13: #{_lambda_.1} parent=0 // pred_fallthru
    _
  // Predicated region
  $region14: #{_lambda_.1} parent=0 // pred_check
    _
  $region15: #{_lambda_.1} parent=0 // pred_check_branch
    %20 = sbr.rel (0) target = $region17
  $region16: #{_lambda_.1} parent=0 // pred_region
    _
  $region17: #{_lambda_.1} parent=0 // pred_fallthru
    _
  // Predicated region
  $region18: #{_lambda_.1} parent=0 // pred_check
    _
  $region19: #{_lambda_.1} parent=0 // pred_check_branch
    %22 = sbr.rel (0) target = $region21
  $region20: #{_lambda_.1} parent=0 // pred_region
    _
  $region21: #{_lambda_.1} parent=0 // pred_fallthru
    _
  // Predicated region
  $region22: #{_lambda_.1} parent=0 // pred_check
    _
  $region23: #{_lambda_.1} parent=0 // pred_check_branch
    %24 = sbr.rel (0) target = $region25
  $region24: #{_lambda_.1} parent=0 // pred_region
    _
  $region25: #{_lambda_.1} parent=0 // pred_fallthru
    _
  %v25 = vld [vmem:[%s2] sm:$0xff]
  %v26 = vld [vmem:[%s2 + $0x8] sm:$0xff]
  %v27 = vld [vmem:[%s2 + $0x10] sm:$0xff]
  %v28 = vld [vmem:[%s2 + $0x18] sm:$0xff]
  %v29 = vld [vmem:[%s0] sm:$0x1]
  %31 = vset.pattern.permute.xlu0 0
  %32 = vperm.xlu0 %31, %v25
  %v33 = vpop.permute.xlu0 %32
  %36 = vset.pattern.permute.xlu0 0
  %37 = vperm.xlu0 %36, %v26
  %v38 = vpop.permute.xlu0 %37
  %41 = vset.pattern.permute.xlu0 0
  %42 = vperm.xlu0 %41, %v27
  %v43 = vpop.permute.xlu0 %42
  %46 = vset.pattern.permute.xlu0 0
  %47 = vperm.xlu0 %46, %v28
  %v48 = vpop.permute.xlu0 %47
  %v50 = vlaneseq
  %v51 = vshrl.u32 %v50, 7
  %v52 = vsub.s32 0, %v51
  %v53 = vrot.slane %v29, %v52
  %v54 = vmul.f32 %v33, %v53
  %v55 = vmul.f32 %v38, %v53
  %v56 = vmul.f32 %v43, %v53
  %v57 = vmul.f32 %v48, %v53
  %v58 = vld [vmem:[%s0 + $0x1] sm:$0x1]
  %59 = vset.pattern.permute.xlu0 1
  %60 = vperm.xlu0 %59, %v25
  %v61 = vpop.permute.xlu0 %60
  %63 = vset.pattern.permute.xlu0 1
  %64 = vperm.xlu0 %63, %v26
  %v65 = vpop.permute.xlu0 %64
  %67 = vset.pattern.permute.xlu0 1
  %68 = vperm.xlu0 %67, %v27
  %v69 = vpop.permute.xlu0 %68
  %71 = vset.pattern.permute.xlu0 1
  %72 = vperm.xlu0 %71, %v28
  %v73 = vpop.permute.xlu0 %72
  %v75 = vlaneseq
  %v76 = vshrl.u32 %v75, 7
  %v77 = vsub.s32 0, %v76
  %v78 = vrot.slane %v58, %v77
  %v79 = vmul.f32 %v61, %v78
  %v80 = vmul.f32 %v65, %v78
  %v81 = vmul.f32 %v69, %v78
  %v82 = vmul.f32 %v73, %v78
  %v83 = vadd.f32 %v54, %v79
  %v84 = vadd.f32 %v55, %v80
  %v85 = vadd.f32 %v56, %v81
  %v86 = vadd.f32 %v57, %v82
  %v87 = vld [vmem:[%s3] sm:$0xff]
  %v88 = vld [vmem:[%s3 + $0x8] sm:$0xff]
  %v89 = vld [vmem:[%s3 + $0x10] sm:$0xff]
  %v90 = vld [vmem:[%s3 + $0x18] sm:$0xff]
  %92 = vset.pattern.permute.xlu0 0
  %93 = vperm.xlu0 %92, %v87
  %v94 = vpop.permute.xlu0 %93
  %97 = vset.pattern.permute.xlu0 0
  %98 = vperm.xlu0 %97, %v88
  %v99 = vpop.permute.xlu0 %98
  %102 = vset.pattern.permute.xlu0 0
  %103 = vperm.xlu0 %102, %v89
  %v104 = vpop.permute.xlu0 %103
  %107 = vset.pattern.permute.xlu0 0
  %108 = vperm.xlu0 %107, %v90
  %v109 = vpop.permute.xlu0 %108
  %v111 = vadd.f32 %v83, %v94
  %v112 = vadd.f32 %v84, %v99
  %v113 = vadd.f32 %v85, %v104
  %v114 = vadd.f32 %v86, %v109
  %115 = vst [vmem:[%s6] sm:$0xff] %v111
  %116 = vst [vmem:[%s6 + $0x8] sm:$0xff] %v112
  %117 = vst [vmem:[%s6 + $0x10] sm:$0xff] %v113
  %118 = vst [vmem:[%s6 + $0x18] sm:$0xff] %v114
  %v119 = vld [vmem:[%s4] sm:$0xff]
  %v120 = vld [vmem:[%s4 + $0x8] sm:$0xff]
  %v121 = vld [vmem:[%s4 + $0x10] sm:$0xff]
  %v122 = vld [vmem:[%s4 + $0x18] sm:$0xff]
  %v123 = vld [vmem:[%s1] sm:$0x1]
  %125 = vset.pattern.permute.xlu0 0
  %126 = vperm.xlu0 %125, %v119
  %v127 = vpop.permute.xlu0 %126
  %130 = vset.pattern.permute.xlu0 0
  %131 = vperm.xlu0 %130, %v120
  %v132 = vpop.permute.xlu0 %131
  %135 = vset.pattern.permute.xlu0 0
  %136 = vperm.xlu0 %135, %v121
  %v137 = vpop.permute.xlu0 %136
  %140 = vset.pattern.permute.xlu0 0
  %141 = vperm.xlu0 %140, %v122
  %v142 = vpop.permute.xlu0 %141
  %v145 = vlaneseq
  %v146 = vshrl.u32 %v145, 7
  %v147 = vsub.s32 0, %v146
  %v148 = vrot.slane %v123, %v147
  %v150 = vmul.f32 %v127, %v148
  %v151 = vmul.f32 %v132, %v148
  %v152 = vmul.f32 %v137, %v148
  %v153 = vmul.f32 %v142, %v148
  %v154 = vld [vmem:[%s5] sm:$0xff]
  %v155 = vld [vmem:[%s5 + $0x8] sm:$0xff]
  %v156 = vld [vmem:[%s5 + $0x10] sm:$0xff]
  %v157 = vld [vmem:[%s5 + $0x18] sm:$0xff]
  %159 = vset.pattern.permute.xlu0 0
  %160 = vperm.xlu0 %159, %v154
  %v161 = vpop.permute.xlu0 %160
  %164 = vset.pattern.permute.xlu0 0
  %165 = vperm.xlu0 %164, %v155
  %v166 = vpop.permute.xlu0 %165
  %169 = vset.pattern.permute.xlu0 0
  %170 = vperm.xlu0 %169, %v156
  %v171 = vpop.permute.xlu0 %170
  %174 = vset.pattern.permute.xlu0 0
  %175 = vperm.xlu0 %174, %v157
  %v176 = vpop.permute.xlu0 %175
  %v178 = vadd.f32 %v150, %v161
  %v179 = vadd.f32 %v151, %v166
  %v180 = vadd.f32 %v152, %v171
  %v181 = vadd.f32 %v153, %v176
  %182 = vst [vmem:[%s7] sm:$0xff] %v178
  %183 = vst [vmem:[%s7 + $0x8] sm:$0xff] %v179
  %184 = vst [vmem:[%s7 + $0x10] sm:$0xff] %v180
  %185 = vst [vmem:[%s7 + $0x18] sm:$0xff] %v181
  // Predicated region
  $region26: #{_lambda_.1} parent=0 // pred_check
    _
  $region27: #{_lambda_.1} parent=0 // pred_check_branch
    %187 = sbr.rel (0) target = $region29
  $region28: #{_lambda_.1} parent=0 // pred_region
    _
  $region29: #{_lambda_.1} parent=0 // pred_fallthru
    _
  // Predicated region
  $region30: #{_lambda_.1} parent=0 // pred_check
    _
  $region31: #{_lambda_.1} parent=0 // pred_check_branch
    %189 = sbr.rel (0) target = $region33
  $region32: #{_lambda_.1} parent=0 // pred_region
    _
  $region33: #{_lambda_.1} parent=0 // pred_fallthru
    _
  // Predicated region
  $region34: #{_lambda_.1} parent=0 // pred_check
    _
  $region35: #{_lambda_.1} parent=0 // pred_check_branch
    %191 = sbr.rel (0) target = $region37
  $region36: #{_lambda_.1} parent=0 // pred_region
    _
  $region37: #{_lambda_.1} parent=0 // pred_fallthru
    _
  // Predicated region
  $region38: #{_lambda_.1} parent=0 // pred_check
    _
  $region39: #{_lambda_.1} parent=0 // pred_check_branch
    %193 = sbr.rel (0) target = $region41
  $region40: #{_lambda_.1} parent=0 // pred_region
    _
  $region41: #{_lambda_.1} parent=0 // pred_fallthru
    _

</llo_original>
